<compile_context>
chip_gen: v6e
topology: v6e:2x2x1
jax: 0.10.0
libtpu: 0.0.40
codegen_flags: <defaults>
</compile_context>

<pallas_src>
import functools

import jax
import jax.numpy as jnp
from jax import lax
from jax.experimental import pallas as pl
from jax.experimental.pallas import tpu as pltpu


# ---------------------------------------------------------------------------
# Weight precompute (wrapper-side, weight-only -- hoisted out of the kernel).
# ---------------------------------------------------------------------------

def _nac_effective_weight(w_hat, m_hat):
    # NAC: W = tanh(W_hat) * sigmoid(M_hat)
    return jnp.tanh(w_hat) * jax.nn.sigmoid(m_hat)


def _fused_weight(wt_hat, mt_hat, ws_hat, ms_hat):
    """W_eff[o, s*n_terms + t] = w_seq[o, s] * w_term[0, t]  -> (n_out, K)."""
    w_term = _nac_effective_weight(wt_hat, mt_hat)       # (1, n_terms)
    w_seq = _nac_effective_weight(ws_hat, ms_hat)        # (n_out, n_steps)
    n_out, n_steps = w_seq.shape
    n_terms = w_term.shape[1]
    w_eff = w_seq[:, :, None] * w_term[0][None, None, :]  # (n_out, n_steps, n_terms)
    return w_eff.reshape(n_out, n_steps * n_terms).astype(jnp.float32)


def _auto_b_tile(batch):
    """Pick a batch tile: multiple of 128, in [128, 4096], targeting ~8 steps."""
    t = pl.cdiv(batch, 8)
    t = pl.cdiv(t, 128) * 128
    return int(max(128, min(4096, t)))


# ---------------------------------------------------------------------------
# Kernel
# ---------------------------------------------------------------------------

def _batch_kernel(w_eff_ref, img_ref, out_ref):
    # w_eff_ref: (n_out_pad, K)      -- resident across the grid (constant map)
    # img_ref:   (b_tile, K)         -- natural (B, K) layout, no host transpose
    # out_ref:   (n_out_pad, b_tile) -- lane-dense along the batch axis
    # Contract the shared last dim; the compiler's in-VMEM transpose for the
    # RHS is XLU work hidden under the DMA of the next tile.
    out_ref[...] = lax.dot_general(
        w_eff_ref[...], img_ref[...],
        dimension_numbers=(((1,), (1,)), ((), ())),
        preferred_element_type=jnp.float32)


# ---------------------------------------------------------------------------
# Wrappers
# ---------------------------------------------------------------------------

@functools.partial(jax.jit, static_argnames=("b_tile",))
def market_image_encoder_batch(market_images, wt_hat, mt_hat, ws_hat, ms_hat,
                               *, b_tile=None):
    """Batched forward: (B, n_steps, n_terms) -> (B, n_output_terms)."""
    B, n_steps, n_terms = market_images.shape
    n_out, n_steps_w = ws_hat.shape
    assert n_steps_w == n_steps
    assert wt_hat.shape == (1, n_terms) and mt_hat.shape == (1, n_terms)
    assert ms_hat.shape == (n_out, n_steps)

    k = n_steps * n_terms
    if b_tile is None:
        b_tile = _auto_b_tile(B)

    # bf16 images go straight to the MXU (halves HBM bytes on a
    # bandwidth-bound kernel); anything else is computed in f32.
    compute_dtype = jnp.bfloat16 if market_images.dtype == jnp.bfloat16 else jnp.float32

    w_eff = _fused_weight(wt_hat, mt_hat, ws_hat, ms_hat)         # (n_out, K) f32
    # Full-sublane output rows: zero-pad n_out to a multiple of 8 (weights only).
    n_out_pad = pl.cdiv(n_out, 8) * 8
    if n_out_pad != n_out:
        w_eff = jnp.pad(w_eff, ((0, n_out_pad - n_out), (0, 0)))
    w_eff = w_eff.astype(compute_dtype)

    # Free reshape (contiguous); no-op cast when dtype already matches.
    img_flat = market_images.reshape(B, k).astype(compute_dtype)  # (B, K)

    grid_b = pl.cdiv(B, b_tile)
    out = pl.pallas_call(
        _batch_kernel,
        out_shape=jax.ShapeDtypeStruct((n_out_pad, B), jnp.float32),
        grid=(grid_b,),
        in_specs=[
            pl.BlockSpec((n_out_pad, k), lambda i: (0, 0)),       # weights resident
            pl.BlockSpec((b_tile, k), lambda i: (i, 0)),          # natural layout
        ],
        out_specs=pl.BlockSpec((n_out_pad, b_tile), lambda i: (0, i)),
        compiler_params=pltpu.CompilerParams(
            dimension_semantics=("parallel",)),                   # 2x on v7x megacore
    )(w_eff, img_flat)

    # Small (n_out_pad, B) transpose + row slice on the output only.
    return out[:n_out, :].T                                       # (B, n_out)


@jax.jit
def market_image_encoder(market_image, wt_hat, mt_hat, ws_hat, ms_hat):
    """Module-equivalent forward: (n_steps, n_terms) -> (n_output_terms,).

    Routes B=1 through the batched Pallas kernel (a plain XLA dot is equally
    valid for this launch-overhead-dominated case).
    """
    out = market_image_encoder_batch(market_image[None], wt_hat, mt_hat,
                                     ws_hat, ms_hat)
    return out[0]


# ---------------------------------------------------------------------------
# Pure-JAX reference
# ---------------------------------------------------------------------------

def _reference(market_image, wt_hat, mt_hat, ws_hat, ms_hat):
    w_term = jnp.tanh(wt_hat) * jax.nn.sigmoid(mt_hat)
    w_seq = jnp.tanh(ws_hat) * jax.nn.sigmoid(ms_hat)
    seq = market_image @ w_term.T            # (n_steps, 1)
    return seq[:, 0] @ w_seq.T               # (n_out,)


if __name__ == "__main__":
    n_steps = 16          # rows of the market image
    n_input_terms = 8     # columns (terms per step); n_steps * n_terms = 128
    n_output_terms = 4    # encoder output dim
    batch = 300           # batched demo (exercises the partial edge block)

    key = jax.random.PRNGKey(0)
    k_img, k_batch, k_wt, k_mt, k_ws, k_ms = jax.random.split(key, 6)

    market_image = jax.random.normal(k_img, (n_steps, n_input_terms), jnp.float32)
    market_images = jax.random.normal(k_batch, (batch, n_steps, n_input_terms),
                                      jnp.float32)

    # NAC parameters (W_hat, M_hat) for each encoder, PyTorch (out, in) layout.
    wt_hat = jax.random.normal(k_wt, (1, n_input_terms), jnp.float32)
    mt_hat = jax.random.normal(k_mt, (1, n_input_terms), jnp.float32)
    ws_hat = jax.random.normal(k_ws, (n_output_terms, n_steps), jnp.float32)
    ms_hat = jax.random.normal(k_ms, (n_output_terms, n_steps), jnp.float32)

    # --- single-sample (module-equivalent forward) ---
    out = market_image_encoder(market_image, wt_hat, mt_hat, ws_hat, ms_hat)
    out = jax.block_until_ready(out)
    ref = _reference(market_image, wt_hat, mt_hat, ws_hat, ms_hat)
    assert out.shape == (n_output_terms,)
    assert jnp.allclose(out, ref, atol=1e-4, rtol=1e-5), (out, ref)

    # --- batched, f32 ---
    out_b = market_image_encoder_batch(market_images, wt_hat, mt_hat,
                                       ws_hat, ms_hat)
    out_b = jax.block_until_ready(out_b)
    ref_b = jax.vmap(lambda x: _reference(x, wt_hat, mt_hat, ws_hat, ms_hat))(
        market_images)
    assert out_b.shape == (batch, n_output_terms)
    assert jnp.allclose(out_b, ref_b, atol=1e-4, rtol=1e-5)

    # --- batched, bf16 fast path (looser tolerance) ---
    out_bf = market_image_encoder_batch(market_images.astype(jnp.bfloat16),
                                        wt_hat, mt_hat, ws_hat, ms_hat)
    out_bf = jax.block_until_ready(out_bf)
    assert out_bf.shape == (batch, n_output_terms)
    assert jnp.allclose(out_bf, ref_b, atol=5e-2, rtol=5e-2)

    print("KERNEL_OK")
</pallas_src>

<mosaic_0001>
module attributes {stable_mosaic.version = 11 : i64} {
  func.func @_batch_kernel(%arg0: i32, %arg1: memref<8x128xf32, #tpu.memory_space<vmem>>, %arg2: memref<128x128xf32, #tpu.memory_space<vmem>>, %arg3: memref<8x128xf32, #tpu.memory_space<vmem>>) attributes {dimension_semantics = [#tpu.dimension_semantics<parallel>], iteration_bounds = array<i64: 1>, scalar_prefetch = 0 : i64, scratch_operands = 0 : i64, tpu.core_type = #tpu.core_type<tc>, window_params = [{pipeline_mode = #tpu.pipeline_mode<synchronous>, transform_indices = @transform_0, window_bounds = array<i64: 8, 128>}, {transform_indices = @transform_1, window_bounds = array<i64: 128, 128>}, {transform_indices = @transform_2, window_bounds = array<i64: 8, 128>}]} {
    %c0 = arith.constant 0 : index
    %c0_0 = arith.constant 0 : index
    %0 = vector.load %arg1[%c0, %c0_0] : memref<8x128xf32, #tpu.memory_space<vmem>>, vector<8x128xf32>
    %c0_1 = arith.constant 0 : index
    %c0_2 = arith.constant 0 : index
    %1 = vector.load %arg2[%c0_1, %c0_2] : memref<128x128xf32, #tpu.memory_space<vmem>>, vector<128x128xf32>
    %cst = arith.constant dense<0.000000e+00> : vector<8x128xf32>
    %2 = tpu.matmul %0, %1, %cst {dimension_numbers = #tpu.dot_dimension_numbers<[1], [1], [0], [0], [0, 0, 1, 0], [], []>} : vector<8x128xf32>, vector<128x128xf32>, vector<8x128xf32> -> vector<8x128xf32>
    %c0_3 = arith.constant 0 : index
    %c0_4 = arith.constant 0 : index
    %3 = vector.load %arg3[%c0_3, %c0_4] : memref<8x128xf32, #tpu.memory_space<vmem>>, vector<8x128xf32>
    tpu.vector_store %arg3[%c0_3, %c0_4], %2 {strides = array<i32>} : memref<8x128xf32, #tpu.memory_space<vmem>>, vector<8x128xf32>,
    return
  }
  func.func @transform_0(%arg0: i32) -> (i32, i32) {
    %c0_i32 = arith.constant 0 : i32
    %c0_i32_0 = arith.constant 0 : i32
    %c0_i32_1 = arith.constant 0 : i32
    return %c0_i32, %c0_i32_0 : i32, i32
  }
  func.func @transform_1(%arg0: i32) -> (i32, i32) {
    %c0_i32 = arith.constant 0 : i32
    %c0_i32_0 = arith.constant 0 : i32
    return %arg0, %c0_i32 : i32, i32
  }
  func.func @transform_2(%arg0: i32) -> (i32, i32) {
    %c0_i32 = arith.constant 0 : i32
    %c0_i32_0 = arith.constant 0 : i32
    return %c0_i32, %arg0 : i32, i32
  }
}

</mosaic_0001>

<llo_original>
// kernel: market_image_encoder_batch.1
$region0: #{market_image_encoder_batch.1}
  #allocation0 [shape = 'u32[]', space=smem, size = 0x4, offset = 0x4, fixed_abs, tag = 'smem constant byte address 0x4 - core index']
  #allocation1 [shape = 'u32[144,128]{1,0:T(1,128)}', space=vmem, size = 0x12000, scoped, tag = 'internal scratch']
  %s0 = inlined_call_operand.vmem [shape: f32[8,128], index: 0, kind: input, shape index: {}]
  %s1 = inlined_call_operand.vmem [shape: f32[1,128], index: 1, kind: input, shape index: {}]
  %s2 = inlined_call_operand.vmem [shape: f32[8,1], index: 2, kind: output, shape index: {}]
  %s3 = sld [smem:[#allocation0]]
  $region18: #{market_image_encoder_batch.1} parent=0
    _
  %s5 = ssub.s32 1, %s3
  %s6 = scalar_select 0, %s5, %s3
  // Predicated region
  $region2: #{market_image_encoder_batch.1} parent=0 // pred_check
    _
  $region3: #{market_image_encoder_batch.1} parent=0 // pred_check_branch
    %8 = sbr.rel (0) target = $region5
  $region4: #{market_image_encoder_batch.1} parent=0 // pred_region
    _
  $region5: #{market_image_encoder_batch.1} parent=0 // pred_fallthru
    _
  // Predicated region
  $region6: #{market_image_encoder_batch.1} parent=0 // pred_check
    _
  $region7: #{market_image_encoder_batch.1} parent=0 // pred_check_branch
    %10 = sbr.rel (0) target = $region9
  $region8: #{market_image_encoder_batch.1} parent=0 // pred_region
    _
  $region9: #{market_image_encoder_batch.1} parent=0 // pred_fallthru
    _
  %v11 = vld [vmem:[%s0] sm:$0xff]
  %v12 = vld [vmem:[%s1] sm:$0xff]
  %v13 = vld [vmem:[%s1 + $0x8] sm:$0xff]
  %v14 = vld [vmem:[%s1 + $0x10] sm:$0xff]
  %v15 = vld [vmem:[%s1 + $0x18] sm:$0xff]
  %v16 = vld [vmem:[%s1 + $0x20] sm:$0xff]
  %v17 = vld [vmem:[%s1 + $0x28] sm:$0xff]
  %v18 = vld [vmem:[%s1 + $0x30] sm:$0xff]
  %v19 = vld [vmem:[%s1 + $0x38] sm:$0xff]
  %v20 = vld [vmem:[%s1 + $0x40] sm:$0xff]
  %v21 = vld [vmem:[%s1 + $0x48] sm:$0xff]
  %v22 = vld [vmem:[%s1 + $0x50] sm:$0xff]
  %v23 = vld [vmem:[%s1 + $0x58] sm:$0xff]
  %v24 = vld [vmem:[%s1 + $0x60] sm:$0xff]
  %v25 = vld [vmem:[%s1 + $0x68] sm:$0xff]
  %v26 = vld [vmem:[%s1 + $0x70] sm:$0xff]
  %v27 = vld [vmem:[%s1 + $0x78] sm:$0xff]
  %28 = vmatprep.subr.mxu0 0.0
  %29 = vmatpush1.xpose.msra.mxu0 %v27
  %30 = vmatprep.subr.mxu0 0.0
  %31 = vmatpush1.xpose.msra.mxu0 %v26
  %32 = vmatprep.subr.mxu0 0.0
  %33 = vmatpush1.xpose.msra.mxu0 %v25
  %34 = vmatprep.subr.mxu0 0.0
  %35 = vmatpush1.xpose.msra.mxu0 %v24
  %36 = vmatprep.subr.mxu0 0.0
  %37 = vmatpush1.xpose.msra.mxu0 %v23
  %38 = vmatprep.subr.mxu0 0.0
  %39 = vmatpush1.xpose.msra.mxu0 %v22
  %40 = vmatprep.subr.mxu0 0.0
  %41 = vmatpush1.xpose.msra.mxu0 %v21
  %42 = vmatprep.subr.mxu0 0.0
  %43 = vmatpush1.xpose.msra.mxu0 %v20
  %44 = vmatprep.subr.mxu0 0.0
  %45 = vmatpush1.xpose.msra.mxu0 %v19
  %46 = vmatprep.subr.mxu0 0.0
  %47 = vmatpush1.xpose.msra.mxu0 %v18
  %48 = vmatprep.subr.mxu0 0.0
  %49 = vmatpush1.xpose.msra.mxu0 %v17
  %50 = vmatprep.subr.mxu0 0.0
  %51 = vmatpush1.xpose.msra.mxu0 %v16
  %52 = vmatprep.subr.mxu0 0.0
  %53 = vmatpush1.xpose.msra.mxu0 %v15
  %54 = vmatprep.subr.mxu0 0.0
  %55 = vmatpush1.xpose.msra.mxu0 %v14
  %56 = vmatprep.subr.mxu0 0.0
  %57 = vmatpush1.xpose.msra.mxu0 %v13
  %58 = vmatprep.subr.mxu0 0.0
  %59 = vmatpush1.xpose.msra.mxu0 %v12
  %60 = vmatprep.subr.mxu0 0.0
  %61 = vmatpush2.xpose.msra.mxu0 0.0
  %62 = vmatprep.subr.mxu0 0.0
  %63 = vmatpush2.xpose.msra.mxu0 0.0
  %64 = vmatprep.subr.mxu0 0.0
  %65 = vmatpush2.xpose.msra.mxu0 0.0
  %66 = vmatprep.subr.mxu0 0.0
  %67 = vmatpush2.xpose.msra.mxu0 0.0
  %68 = vmatprep.subr.mxu0 0.0
  %69 = vmatpush2.xpose.msra.mxu0 0.0
  %70 = vmatprep.subr.mxu0 0.0
  %71 = vmatpush2.xpose.msra.mxu0 0.0
  %72 = vmatprep.subr.mxu0 0.0
  %73 = vmatpush2.xpose.msra.mxu0 0.0
  %74 = vmatprep.subr.mxu0 0.0
  %75 = vmatpush2.xpose.msra.mxu0 0.0
  %76 = vmatprep.subr.mxu0 0.0
  %77 = vmatpush2.xpose.msra.mxu0 0.0
  %78 = vmatprep.subr.mxu0 0.0
  %79 = vmatpush2.xpose.msra.mxu0 0.0
  %80 = vmatprep.subr.mxu0 0.0
  %81 = vmatpush2.xpose.msra.mxu0 0.0
  %82 = vmatprep.subr.mxu0 0.0
  %83 = vmatpush2.xpose.msra.mxu0 0.0
  %84 = vmatprep.subr.mxu0 0.0
  %85 = vmatpush2.xpose.msra.mxu0 0.0
  %86 = vmatprep.subr.mxu0 0.0
  %87 = vmatpush2.xpose.msra.mxu0 0.0
  %88 = vmatprep.subr.mxu0 0.0
  %89 = vmatpush2.xpose.msra.mxu0 0.0
  %90 = vmatprep.subr.mxu0 0.0
  %91 = vmatpush2.xpose.msra.mxu0 0.0
  %92 = vmatprep.mubr.f32.mxu0 0.0
  %93 = vmatmul.mubr.f32.gmra.mxu0 %v11
  %v94 = vpop.f32.mrf.mxu0
  %v95 = vadd.f32 0.0, %v94
  %v96 = vpop.f32.mrf.mxu0
  %97 = vdwg.mxu0
  %98 = vst [vmem:[%s2] sm:$0xff] %v95
  // Predicated region
  $region10: #{market_image_encoder_batch.1} parent=0 // pred_check
    _
  $region11: #{market_image_encoder_batch.1} parent=0 // pred_check_branch
    %100 = sbr.rel (0) target = $region13
  $region12: #{market_image_encoder_batch.1} parent=0 // pred_region
    _
  $region13: #{market_image_encoder_batch.1} parent=0 // pred_fallthru
    _
  // Predicated region
  $region14: #{market_image_encoder_batch.1} parent=0 // pred_check
    _
  $region15: #{market_image_encoder_batch.1} parent=0 // pred_check_branch
    %102 = sbr.rel (0) target = $region17
  $region16: #{market_image_encoder_batch.1} parent=0 // pred_region
    _
  $region17: #{market_image_encoder_batch.1} parent=0 // pred_fallthru
    _

</llo_original>
